<compile_context>
chip_gen: v5e
topology: v5e:2x2
jax: 0.10.0
libtpu: 0.0.40
codegen_flags: <defaults>
</compile_context>

<pallas_src>
import functools

import jax
import jax.numpy as jnp
from jax import lax
from jax.experimental import pallas as pl
from jax.experimental.pallas import tpu as pltpu

NBINS = 10             # matplotlib plt.hist default bin count
LANE = 128             # TPU lane width; data laid out lane-dense
BINS_PAD = 16          # bin rows padded to a multiple of 8 sublanes
MINMAX_ROWS = 8        # per-chunk min/max output rows (sublane aligned)
PARAMS_ROWS = 8        # (lo, inv_width) params rows (sublane aligned)
MAX_CHUNK_ROWS = 512   # 512*128*4 B = 256 KiB per input chunk; fits every chip's scoped VMEM


def _minmax_kernel(x_ref, mins_ref, maxs_ref, *, n_valid, chunk_rows):
    """Per-chunk, per-lane min/max of the lane-dense slice (padding masked out)."""
    c = pl.program_id(0)
    x = x_ref[...]                                              # (chunk_rows, LANE) f32
    base = c * (chunk_rows * LANE)
    gid = (base
           + lax.broadcasted_iota(jnp.int32, x.shape, 0) * LANE
           + lax.broadcasted_iota(jnp.int32, x.shape, 1))
    valid = gid < n_valid
    lane_min = jnp.min(jnp.where(valid, x, jnp.inf), axis=0, keepdims=True)    # (1, LANE)
    lane_max = jnp.max(jnp.where(valid, x, -jnp.inf), axis=0, keepdims=True)   # (1, LANE)
    mins_ref[...] = jnp.broadcast_to(lane_min, (MINMAX_ROWS, LANE))
    maxs_ref[...] = jnp.broadcast_to(lane_max, (MINMAX_ROWS, LANE))


def _hist_kernel(x_ref, params_ref, counts_ref, *, n_valid, chunk_rows):
    """Per-chunk, per-(bin, lane) partial histogram counts (int32)."""
    c = pl.program_id(0)
    x = x_ref[...]                                              # (chunk_rows, LANE) f32
    lo = params_ref[0:1, :]                                     # (1, LANE) broadcast scalar
    inv_w = params_ref[1:2, :]                                  # (1, LANE) broadcast scalar

    # Bin index per element; clip so xmax lands in the last (right-inclusive) bin.
    # TODO(synk): float32 floor-binning can differ by one bin from np.histogram's
    # exact edge comparisons for values sitting exactly on an interior edge, and
    # NaN/Inf inputs are silently clipped into bins 0/9 instead of erroring.
    idx = jnp.floor((x - lo) * inv_w).astype(jnp.int32)
    idx = jnp.clip(idx, 0, NBINS - 1)

    # Padding elements match no bin.
    base = c * (chunk_rows * LANE)
    gid = (base
           + lax.broadcasted_iota(jnp.int32, x.shape, 0) * LANE
           + lax.broadcasted_iota(jnp.int32, x.shape, 1))
    idx = jnp.where(gid < n_valid, idx, -1)

    # Exactly NBINS compares per element (not 128), int32 accumulation, only
    # sublane reductions in-kernel; the tiny cross-lane/cross-chunk sum is done
    # in the wrapper.  (For very large N this per-bin sum could additionally be
    # moved onto the MXU via a ones @ one-hot dot on v6e/v7x.)
    row_iota = lax.broadcasted_iota(jnp.int32, (BINS_PAD, LANE), 0)
    partial = jnp.zeros((BINS_PAD, LANE), jnp.int32)
    for b in range(NBINS):
        lane_cnt = jnp.sum((idx == b).astype(jnp.int32), axis=0, keepdims=True)  # (1, LANE)
        partial = partial + jnp.where(row_iota == b, lane_cnt, 0)                # place in row b
    counts_ref[...] = partial                                   # (BINS_PAD, LANE)


def hist_forward(x, msg=""):
    """Pallas equivalent of Hist(msg).forward(x).

    Returns (x, counts): x unchanged (the module's return value) and the 10-bin
    histogram counts of x[:, 0, 0].flatten() (what plt.hist would plot).
    """
    B, C, H, W = x.shape
    del C, msg  # msg only feeds plt.title (host-side viz, no Pallas equivalent)
    n = B * W
    assert n > 0

    # 1. Pre-slice x[:, 0, 0] in XLA (reads only B*W elements) and cast to f32.
    xs = x[:, 0, 0, :].astype(jnp.float32).reshape(-1)          # (n,)

    # 2. Lane-dense layout: pad to whole (chunk_rows, 128) chunks.
    total_rows = -(-n // LANE)
    rows_pad8 = -(-total_rows // 8) * 8
    chunk_rows = min(MAX_CHUNK_ROWS, rows_pad8)
    num_chunks = -(-rows_pad8 // chunk_rows)
    padded_rows = num_chunks * chunk_rows
    xs = jnp.pad(xs, (0, padded_rows * LANE - n))               # zero pad; masked in-kernel
    xd = xs.reshape(padded_rows, LANE)

    cparams = pltpu.CompilerParams(dimension_semantics=("parallel",))

    # 3. Global min/max pre-pass (per-chunk per-lane partials; tiny final reduce in XLA).
    mins, maxs = pl.pallas_call(
        functools.partial(_minmax_kernel, n_valid=n, chunk_rows=chunk_rows),
        out_shape=(jax.ShapeDtypeStruct((num_chunks * MINMAX_ROWS, LANE), jnp.float32),
                   jax.ShapeDtypeStruct((num_chunks * MINMAX_ROWS, LANE), jnp.float32)),
        grid=(num_chunks,),
        in_specs=[pl.BlockSpec((chunk_rows, LANE), lambda c: (c, 0))],
        out_specs=(pl.BlockSpec((MINMAX_ROWS, LANE), lambda c: (c, 0)),
                   pl.BlockSpec((MINMAX_ROWS, LANE), lambda c: (c, 0))),
        compiler_params=cparams,
    )(xd)
    xmin = jnp.min(mins)
    xmax = jnp.max(maxs)

    # 4. Bin edges. Constant input: matplotlib expands range to (v - 0.5, v + 0.5).
    span = xmax - xmin
    degenerate = span == 0.0
    lo = jnp.where(degenerate, xmin - 0.5, xmin)
    inv_w = jnp.float32(NBINS) / jnp.where(degenerate, jnp.float32(1.0), span)
    params = jnp.concatenate(
        [jnp.broadcast_to(lo, (1, LANE)),
         jnp.broadcast_to(inv_w, (1, LANE)),
         jnp.zeros((PARAMS_ROWS - 2, LANE), jnp.float32)],
        axis=0).astype(jnp.float32)                             # (8, 128)

    # 5. Histogram pass: per-chunk (bin, lane) int32 partial counts, chunks parallel.
    partial = pl.pallas_call(
        functools.partial(_hist_kernel, n_valid=n, chunk_rows=chunk_rows),
        out_shape=jax.ShapeDtypeStruct((num_chunks * BINS_PAD, LANE), jnp.int32),
        grid=(num_chunks,),
        in_specs=[pl.BlockSpec((chunk_rows, LANE), lambda c: (c, 0)),
                  pl.BlockSpec((PARAMS_ROWS, LANE), lambda c: (0, 0))],
        out_specs=pl.BlockSpec((BINS_PAD, LANE), lambda c: (c, 0)),
        compiler_params=cparams,
    )(xd, params)

    # Tiny wrapper-side reduction over chunks and lanes (exact, int32).
    counts = jnp.sum(partial.reshape(num_chunks, BINS_PAD, LANE), axis=(0, 2))[:NBINS]
    counts = counts.astype(jnp.float32)

    # Identity pass-through: return x directly — no copy kernel, no HBM traffic.
    return x, counts


if __name__ == "__main__":
    import numpy as np

    key = jax.random.PRNGKey(0)
    B, C, H, W = 2, 4, 16, 16
    x = jax.random.normal(key, (B, C, H, W), dtype=jnp.float32)

    x_out, counts = hist_forward(x, msg="synthetic hist")
    x_out = jax.block_until_ready(x_out)
    counts = jax.block_until_ready(counts)

    # Identity semantics + every sliced element counted exactly once.
    assert x_out.shape == x.shape
    assert bool(jnp.all(x_out == x))
    assert int(jnp.sum(counts)) == B * W

    # Cross-check against numpy's default binning (same as matplotlib); allow a
    # couple of edge-rounding flips from float32 floor-binning.
    ref_counts, _ = np.histogram(np.asarray(x)[:, 0, 0].reshape(-1), bins=NBINS)
    assert int(np.abs(np.asarray(counts) - ref_counts.astype(np.float32)).sum()) <= 4

    print("KERNEL_OK")
</pallas_src>

<mosaic_0001>
module attributes {stable_mosaic.version = 11 : i64} {
  func.func @_minmax_kernel(%arg0: i32, %arg1: memref<8x128xf32, #tpu.memory_space<vmem>>, %arg2: memref<8x128xf32, #tpu.memory_space<vmem>>, %arg3: memref<8x128xf32, #tpu.memory_space<vmem>>) attributes {dimension_semantics = [#tpu.dimension_semantics<parallel>], iteration_bounds = array<i64: 1>, scalar_prefetch = 0 : i64, scratch_operands = 0 : i64, tpu.core_type = #tpu.core_type<tc>, window_params = [{transform_indices = @transform_0, window_bounds = array<i64: 8, 128>}, {transform_indices = @transform_1, window_bounds = array<i64: 8, 128>}, {transform_indices = @transform_2, window_bounds = array<i64: 8, 128>}]} {
    %c0 = arith.constant 0 : index
    %c0_0 = arith.constant 0 : index
    %0 = vector.load %arg1[%c0, %c0_0] : memref<8x128xf32, #tpu.memory_space<vmem>>, vector<8x128xf32>
    %c1024_i32 = arith.constant 1024 : i32
    %1 = arith.muli %arg0, %c1024_i32 : i32
    %2 = tpu.iota {dimensions = array<i32: 0>} : vector<8x128xi32>
    %c128_i32 = arith.constant 128 : i32
    %3 = vector.broadcast %c128_i32 : i32 to vector<8x128xi32>
    %4 = arith.muli %2, %3 : vector<8x128xi32>
    %5 = vector.broadcast %1 : i32 to vector<8x128xi32>
    %6 = arith.addi %5, %4 : vector<8x128xi32>
    %7 = tpu.iota {dimensions = array<i32: 1>} : vector<8x128xi32>
    %8 = arith.addi %6, %7 : vector<8x128xi32>
    %c32_i32 = arith.constant 32 : i32
    %9 = vector.broadcast %c32_i32 : i32 to vector<8x128xi32>
    %10 = arith.cmpi slt, %8, %9 : vector<8x128xi32>
    %cst = arith.constant 0x7F800000 : f32
    %11 = vector.broadcast %cst : f32 to vector<8x128xf32>
    %12 = arith.select %10, %0, %11 : vector<8x128xi1>, vector<8x128xf32>
    %cst_1 = arith.constant dense<0x7F800000> : vector<128xf32>
    %13 = vector.multi_reduction <minimumf>, %12, %cst_1 [0] : vector<8x128xf32> to vector<128xf32>
    %14 = vector.shape_cast %13 : vector<128xf32> to vector<1x128xf32>
    %cst_2 = arith.constant 0xFF800000 : f32
    %15 = vector.broadcast %cst_2 : f32 to vector<8x128xf32>
    %16 = arith.select %10, %0, %15 : vector<8x128xi1>, vector<8x128xf32>
    %cst_3 = arith.constant dense<0xFF800000> : vector<128xf32>
    %17 = vector.multi_reduction <maximumf>, %16, %cst_3 [0] : vector<8x128xf32> to vector<128xf32>
    %18 = vector.shape_cast %17 : vector<128xf32> to vector<1x128xf32>
    %19 = vector.shape_cast %14 : vector<1x128xf32> to vector<1x128xf32>
    %20 = vector.broadcast %19 : vector<1x128xf32> to vector<8x128xf32>
    %c0_4 = arith.constant 0 : index
    %c0_5 = arith.constant 0 : index
    %21 = vector.load %arg2[%c0_4, %c0_5] : memref<8x128xf32, #tpu.memory_space<vmem>>, vector<8x128xf32>
    tpu.vector_store %arg2[%c0_4, %c0_5], %20 {strides = array<i32>} : memref<8x128xf32, #tpu.memory_space<vmem>>, vector<8x128xf32>,
    %22 = vector.shape_cast %18 : vector<1x128xf32> to vector<1x128xf32>
    %23 = vector.broadcast %22 : vector<1x128xf32> to vector<8x128xf32>
    %c0_6 = arith.constant 0 : index
    %c0_7 = arith.constant 0 : index
    %24 = vector.load %arg3[%c0_6, %c0_7] : memref<8x128xf32, #tpu.memory_space<vmem>>, vector<8x128xf32>
    tpu.vector_store %arg3[%c0_6, %c0_7], %23 {strides = array<i32>} : memref<8x128xf32, #tpu.memory_space<vmem>>, vector<8x128xf32>,
    return
  }
  func.func @transform_0(%arg0: i32) -> (i32, i32) {
    %c0_i32 = arith.constant 0 : i32
    %c0_i32_0 = arith.constant 0 : i32
    return %arg0, %c0_i32 : i32, i32
  }
  func.func @transform_1(%arg0: i32) -> (i32, i32) {
    %c0_i32 = arith.constant 0 : i32
    %c0_i32_0 = arith.constant 0 : i32
    return %arg0, %c0_i32 : i32, i32
  }
  func.func @transform_2(%arg0: i32) -> (i32, i32) {
    %c0_i32 = arith.constant 0 : i32
    %c0_i32_0 = arith.constant 0 : i32
    return %arg0, %c0_i32 : i32, i32
  }
}

</mosaic_0001>

<llo_original>
// kernel: tpu_custom_call.1
$region0: #{tpu_custom_call.1}
  #allocation0 [shape = 'u32[]', space=smem, size = 0x4, offset = 0x4, fixed_abs, tag = 'smem constant byte address 0x4 - core index']
  #allocation1 [shape = 'u32[72,128]{1,0:T(1,128)}', space=vmem, size = 0x9000, scoped, tag = 'internal scratch']
  %s0 = inlined_call_operand.hbm [shape: f32[8,128], index: 0, kind: input, shape index: {}]
  %s1 = inlined_call_operand.hbm [shape: f32[8,128], index: 1, kind: output, shape index: {0}]
  %s2 = inlined_call_operand.hbm [shape: f32[8,128], index: 2, kind: output, shape index: {1}]
  %3 = xla_tuple %s1, %s2
  %s4 = sld [smem:[#allocation0]]
  $region26: #{tpu_custom_call.1} parent=0
    _
  %s6 = ssub.s32 1, %s4
  %s7 = scalar_select 0, %s6, %s4
  $region1: #{tpu_custom_call.1} parent=0
    #allocation2 [shape = 'u8[4096]{0}', space=vmem, size = 0x1000, scoped, tag = 'input window, operand 0, single buffered']
    #allocation3 [shape = 's32[1]{0}', space=sflag, size = 0x4, scoped, tag = 'scoped memory for tpu_custom_call.1']
    #allocation4 [shape = 's32[1]{0}', space=sflag, size = 0x4, scoped, tag = 'scoped memory for tpu_custom_call.1']
    #allocation5 [shape = 'u8[4096]{0}', space=vmem, size = 0x1000, scoped, tag = 'output window, operand 0, single buffered']
    #allocation6 [shape = 'u8[4096]{0}', space=vmem, size = 0x1000, scoped, tag = 'output window, operand 1, single buffered']
    #allocation7 [shape = 's32[1]{0}', space=sflag, size = 0x4, scoped, tag = 'scoped memory for tpu_custom_call.1']
    %8 = vsyncpa [#allocation3], 0
    %9 = vsyncpa [#allocation4], 0
    %10 = vsyncpa [#allocation7], 0
    // Predicated region
    $region2: #{tpu_custom_call.1} parent=1 // pred_check
      _
    $region3: #{tpu_custom_call.1} parent=1 // pred_check_branch
      %12 = sbr.rel (0) target = $region5
    $region4: #{tpu_custom_call.1} parent=1 // pred_region
      %14 = vsyncadd [#allocation3], 0
      %s16 = sshll.u32 %s0, 4
      %s17 = int_to_ptr.hbm [resolvable:$true] %s16
      %s18 = sshll.u32 [#allocation2], 4
      %s19 = int_to_ptr.vmem [resolvable:$true] %s18
      %21 = dma.hbm_to_vmem [thread:$0]  %s17, 128, %s19, [#allocation3]
    $region5: #{tpu_custom_call.1} parent=1 // pred_fallthru
      _
    // Predicated region
    $region6: #{tpu_custom_call.1} parent=1 // pred_check
      _
    $region7: #{tpu_custom_call.1} parent=1 // pred_check_branch
      %23 = sbr.rel (0) target = $region9
    $region8: #{tpu_custom_call.1} parent=1 // pred_region
      %25 = dma.done [#allocation3], 128
    $region9: #{tpu_custom_call.1} parent=1 // pred_fallthru
      _
    %v26 = vld [vmem:[#allocation2] sm:$0xff]
    %s27 = smul.u32 0, 1024
    %v28 = vlaneseq
    %v29 = vshrl.u32 %v28, 7
    %v30 = vmul.u32 %v29, 128
    %v31 = vstv %s27
    %v32 = vadd.s32 %v31, %v30
    %v33 = vlaneseq
    %v34 = vand.u32 %v33, 127
    %v35 = vadd.s32 %v32, %v34
    %vm36 = vcmp.lt.s32.totalorder %v35, 32
    %v37 = vsel %vm36, %v26, inf
    %v38 = vrot.slane %v37, 4
    %v39 = vmin.f32 %v37, %v38
    %v40 = vrot.slane %v39, 2
    %v41 = vmin.f32 %v39, %v40
    %v42 = vrot.slane %v41, 1
    %v43 = vmin.f32 %v41, %v42
    %v44 = vsel %vm36, %v26, -inf
    %v45 = vrot.slane %v44, 4
    %v46 = vmax.f32 %v44, %v45
    %v47 = vrot.slane %v46, 2
    %v48 = vmax.f32 %v46, %v47
    %v49 = vrot.slane %v48, 1
    %v50 = vmax.f32 %v48, %v49
    %51 = vst [vmem:[#allocation5] sm:$0xff] %v43
    %52 = vst [vmem:[#allocation6] sm:$0xff] %v50
    // Predicated region
    $region10: #{tpu_custom_call.1} parent=1 // pred_check
      _
    $region11: #{tpu_custom_call.1} parent=1 // pred_check_branch
      %54 = sbr.rel (0) target = $region13
    $region12: #{tpu_custom_call.1} parent=1 // pred_region
      %56 = vsyncadd [#allocation4], 0
      %s58 = sshll.u32 [#allocation5], 4
      %s59 = int_to_ptr.vmem [resolvable:$true] %s58
      %s60 = sshll.u32 %s1, 4
      %s61 = int_to_ptr.hbm [resolvable:$true] %s60
      %63 = dma.vmem_to_hbm [thread:$0]  %s59, 128, %s61, [#allocation4]
    $region13: #{tpu_custom_call.1} parent=1 // pred_fallthru
      _
    // Predicated region
    $region14: #{tpu_custom_call.1} parent=1 // pred_check
      _
    $region15: #{tpu_custom_call.1} parent=1 // pred_check_branch
      %65 = sbr.rel (0) target = $region17
    $region16: #{tpu_custom_call.1} parent=1 // pred_region
      %67 = vsyncadd [#allocation7], 0
      %s69 = sshll.u32 [#allocation6], 4
      %s70 = int_to_ptr.vmem [resolvable:$true] %s69
      %s71 = sshll.u32 %s2, 4
      %s72 = int_to_ptr.hbm [resolvable:$true] %s71
      %74 = dma.vmem_to_hbm [thread:$0]  %s70, 128, %s72, [#allocation7]
    $region17: #{tpu_custom_call.1} parent=1 // pred_fallthru
      _
    // Predicated region
    $region18: #{tpu_custom_call.1} parent=1 // pred_check
      _
    $region19: #{tpu_custom_call.1} parent=1 // pred_check_branch
      %76 = sbr.rel (0) target = $region21
    $region20: #{tpu_custom_call.1} parent=1 // pred_region
      %78 = dma.done [#allocation4], 128
    $region21: #{tpu_custom_call.1} parent=1 // pred_fallthru
      _
    // Predicated region
    $region22: #{tpu_custom_call.1} parent=1 // pred_check
      _
    $region23: #{tpu_custom_call.1} parent=1 // pred_check_branch
      %80 = sbr.rel (0) target = $region25
    $region24: #{tpu_custom_call.1} parent=1 // pred_region
      %82 = dma.done [#allocation7], 128
    $region25: #{tpu_custom_call.1} parent=1 // pred_fallthru
      _
    %83 = vsyncpa [#allocation3], 1
    %84 = vsyncpa [#allocation4], 1
    %85 = vsyncpa [#allocation7], 1

</llo_original>
